<compile_context>
chip_gen: v5e
topology: v5e:2x2
jax: 0.10.0
libtpu: 0.0.40
codegen_flags: <defaults>
</compile_context>

<pallas_src>
import functools

import jax
import jax.numpy as jnp
from jax.experimental import pallas as pl
from jax.experimental.pallas import tpu as pltpu


def _round_up(x, m):
    return ((x + m - 1) // m) * m


def _interp_matrix_1d(in_size: int, out_size: int) -> jnp.ndarray:
    """1-D bilinear interp weights matching PyTorch align_corners=False."""
    i = jnp.arange(out_size, dtype=jnp.float32)
    src = jnp.maximum((i + 0.5) * (in_size / out_size) - 0.5, 0.0)
    i0 = jnp.clip(jnp.floor(src).astype(jnp.int32), 0, in_size - 1)
    i1 = jnp.minimum(i0 + 1, in_size - 1)
    frac = src - i0.astype(jnp.float32)
    m = jnp.zeros((out_size, in_size), jnp.float32)
    rows = jnp.arange(out_size)
    m = m.at[rows, i0].add(1.0 - frac)
    m = m.at[rows, i1].add(frac)
    return m


def _default_vmem_limit_bytes() -> int:
    # Leave headroom below physical VMEM (v7x 64 MiB per core, v5e/v6e 128 MiB).
    try:
        cap = pltpu.get_tpu_info().vmem_capacity_bytes
    except Exception:
        cap = 64 * 1024 * 1024
    return int(cap) * 3 // 4


def _pick_tile_n(n_total: int, K: int, itemsize: int, budget: int) -> int:
    """Output-column tile: multiple of 128 (MXU lane alignment), bounded by VMEM."""
    if n_total <= 512:
        return n_total
    # Double-buffered fused-weight block (6*K*TILE_N*itemsize) <= ~40% of the budget.
    cap = max(128, (budget * 2 // 5) // max(1, 6 * K * itemsize))
    for honor_cap in (True, False):
        for t in range(512, 127, -128):
            if n_total % t == 0 and (not honor_cap or t <= cap):
                return t
    return n_total  # no 128-multiple divisor <= 512; fall back to the full width


def _pick_tile_h(H2, H, K, tile_n, itemsize, out_itemsize, sublane, budget,
                 max_tile_h):
    """Largest row tile whose resident VMEM fits the budget (and megacore cap)."""
    cands = sorted({t for t in range(8, H2 + 1, 8) if H2 % t == 0} | {H2},
                   reverse=True)
    fixed = (2 * H * K * itemsize            # x block (resident, double-buffered)
             + 6 * K * tile_n * itemsize)    # m block (double-buffered)
    fallback = cands[-1]
    for t in cands:
        if t > max_tile_h:
            continue
        rows = _round_up(t + 2, sublane)
        per = (2 * rows * H * itemsize           # uh block (double-buffered)
               + 2 * t * tile_n * out_itemsize   # out block (double-buffered)
               + rows * K * (4 + itemsize)       # up_h f32 result + cast copy
               + t * tile_n * 4)                 # f32 accumulator
        if fixed + per <= budget:
            return t
    return fallback


def make_upsample2_params(weight_oihw, H, W, *, tile_h=None, tile_n=None,
                          compute_dtype=jnp.bfloat16, out_dtype=None,
                          batch_hint=1, vmem_limit_bytes=None):
    """Precompute (once per weight / spatial shape) the fused kernel operands."""
    cout, cin, kh, kw = weight_oihw.shape
    assert (kh, kw) == (3, 3)
    H2, W2 = 2 * H, 2 * W
    K, Ntot = W * cin, W2 * cout
    itemsize = jnp.dtype(compute_dtype).itemsize
    out_dtype = compute_dtype if out_dtype is None else out_dtype
    out_itemsize = jnp.dtype(out_dtype).itemsize
    sublane = 16 if itemsize == 2 else 8

    if vmem_limit_bytes is None:
        vmem_limit_bytes = _default_vmem_limit_bytes()
    budget = int(vmem_limit_bytes * 0.6)  # headroom for compiler temporaries

    if tile_n is None:
        tile_n = _pick_tile_n(Ntot, K, itemsize, budget)
    assert Ntot % tile_n == 0 and (tile_n % 128 == 0 or tile_n == Ntot)
    n_ctiles = Ntot // tile_n

    if tile_h is None:
        # v7x megacore: guarantee >= 2 parallel grid iterations even at batch == 1
        # by splitting the rows when there is only a single channel tile.
        max_tile_h = H2
        if batch_hint * n_ctiles < 2 and H2 >= 16:
            max_tile_h = max(8, H2 // 2)
        tile_h = _pick_tile_h(H2, H, K, tile_n, itemsize, out_itemsize, sublane,
                              budget, max_tile_h)
    assert H2 % tile_h == 0 and (tile_h % 8 == 0 or tile_h == H2)
    n_tiles = H2 // tile_h
    rows_pad = _round_up(tile_h + 2, sublane)

    uh = _interp_matrix_1d(H, H2)                                   # (H2, H)
    uw = _interp_matrix_1d(W, W2)                                   # (W2, W)
    # Zero rows at 0 and beyond H2 / W2 implement the conv's padding=1 (plus the
    # sublane-alignment padding of each row tile).
    hp_rows = (n_tiles - 1) * tile_h + rows_pad
    uh_p = jnp.zeros((hp_rows, H), jnp.float32).at[1:H2 + 1].set(uh)
    uw_p = jnp.zeros((W2 + 2, W), jnp.float32).at[1:W2 + 1].set(uw)

    # Per-row-tile H-interp blocks (overlapping by the 3x3 conv's 2-row halo) so the
    # kernel needs no dynamic slicing: uh_tiles[j] = uh_p[j*tile_h : j*tile_h+rows_pad]
    uh_tiles = jnp.stack(
        [uh_p[j * tile_h: j * tile_h + rows_pad] for j in range(n_tiles)], axis=0)

    # Fuse the W-direction bilinear upsample with the 3x3 conv taps:
    #   m[kh, w*Cin+ci, x*Cout+co] = sum_kw uw_p[x+kw, w] * weight[co, ci, kh, kw]
    uw_shift = jnp.stack([uw_p[k:k + W2] for k in range(3)], axis=0)    # (kw, x, w)
    wt = jnp.transpose(weight_oihw, (2, 3, 1, 0)).astype(jnp.float32)   # (kh,kw,ci,co)
    m = jnp.einsum('kxw,hkio->hwixo', uw_shift, wt).reshape(3, K, Ntot)

    return dict(uh_tiles=uh_tiles.astype(compute_dtype),
                m=m.astype(compute_dtype),
                tile_h=int(tile_h), tile_n=int(tile_n), rows_pad=int(rows_pad),
                H=int(H), W=int(W), cin=int(cin), cout=int(cout),
                out_dtype=out_dtype, vmem_limit_bytes=int(vmem_limit_bytes))


def _upsample2_conv_kernel(x_ref, uh_ref, m_ref, o_ref, *, tile_h):
    # x_ref : (1, H, W*Cin)       lane-dense input rows (resident per image)
    # uh_ref: (1, rows_pad, H)    H-direction bilinear weights for this row tile
    #                             (conv zero-pad rows + sublane padding included)
    # m_ref : (3, W*Cin, TILE_N)  fused [W-bilinear-upsample x 3x3 conv taps],
    #                             one matrix per kh row offset, TILE_N output columns
    # o_ref : (1, tile_h, TILE_N) lane-dense output block
    x = x_ref[0]
    uh = uh_ref[0]
    # H-direction 2x bilinear upsample (+ conv H zero-padding): one MXU matmul.
    up_h = jnp.dot(uh, x, preferred_element_type=jnp.float32)    # (rows_pad, W*Cin)
    # NOTE: bf16 path rounds the interpolated activations to bf16 here before the
    # conv matmuls -- dominant error source of the bf16 path.
    up_h = up_h.astype(m_ref.dtype)
    # W-direction upsample + all 9 conv taps: 3 lane-dense matmuls (K=W*Cin,
    # N=TILE_N), one per kh row offset.  Accumulator starts from the first matmul
    # (no zeros + extra VPU add pass); the += chain stays on the MXU result path.
    acc = jnp.dot(up_h[0:tile_h, :], m_ref[0], preferred_element_type=jnp.float32)
    acc = acc + jnp.dot(up_h[1:tile_h + 1, :], m_ref[1],
                        preferred_element_type=jnp.float32)
    acc = acc + jnp.dot(up_h[2:tile_h + 2, :], m_ref[2],
                        preferred_element_type=jnp.float32)
    o_ref[0] = acc.astype(o_ref.dtype)


def upsample2_apply(params, x_flat):
    """Channels-last production path: (N, H, W*Cin) -> (N, 2H, 2W*Cout)."""
    N, Hx, Kx = x_flat.shape
    H, W, cin, cout = params["H"], params["W"], params["cin"], params["cout"]
    assert (Hx, Kx) == (H, W * cin)
    tile_h, tile_n, rows_pad = params["tile_h"], params["tile_n"], params["rows_pad"]
    H2, Ntot, K = 2 * H, 2 * W * cout, W * cin
    n_tiles, n_ctiles = H2 // tile_h, Ntot // tile_n
    cdt = params["m"].dtype
    x_flat = x_flat.astype(cdt)

    kernel = functools.partial(_upsample2_conv_kernel, tile_h=tile_h)
    # Grid order (image, channel-tile, row-tile): row tiles innermost so each m block
    # streams through VMEM once per image while x stays resident; all independent.
    out_flat = pl.pallas_call(
        kernel,
        out_shape=jax.ShapeDtypeStruct((N, H2, Ntot), params["out_dtype"]),
        grid=(N, n_ctiles, n_tiles),
        in_specs=[
            pl.BlockSpec((1, H, K), lambda n, c, j: (n, 0, 0)),
            pl.BlockSpec((1, rows_pad, H), lambda n, c, j: (j, 0, 0)),
            pl.BlockSpec((3, K, tile_n), lambda n, c, j: (0, 0, c)),
        ],
        out_specs=pl.BlockSpec((1, tile_h, tile_n), lambda n, c, j: (n, j, c)),
        compiler_params=pltpu.CompilerParams(
            dimension_semantics=("parallel", "parallel", "parallel"),
            vmem_limit_bytes=params["vmem_limit_bytes"],
        ),
    )(x_flat, params["uh_tiles"], params["m"])
    return out_flat


def upsample2_forward_nchw(params, x_nchw):
    """NCHW compatibility wrapper (adds two XLA transposes == two HBM passes;
    prefer upsample2_apply on channels-last activations inside the decoder)."""
    N, C, H, W = x_nchw.shape
    assert (H, W, C) == (params["H"], params["W"], params["cin"])
    cout = params["cout"]
    x_flat = jnp.transpose(x_nchw, (0, 2, 3, 1)).reshape(N, H, W * C)
    out_flat = upsample2_apply(params, x_flat)
    return jnp.transpose(out_flat.reshape(N, 2 * H, 2 * W, cout), (0, 3, 1, 2))


def _reference(x_nchw, weight_oihw):
    # Independent reference: jax.image.resize bilinear (matches PyTorch
    # align_corners=False for exact 2x) + XLA conv, all in f32.
    N, C, H, W = x_nchw.shape
    up = jax.image.resize(x_nchw.astype(jnp.float32), (N, C, 2 * H, 2 * W),
                          method="bilinear")
    return jax.lax.conv_general_dilated(
        up, weight_oihw.astype(jnp.float32), window_strides=(1, 1),
        padding=((1, 1), (1, 1)), dimension_numbers=("NCHW", "OIHW", "NCHW"))


if __name__ == "__main__":
    key = jax.random.PRNGKey(0)
    kx, kw = jax.random.split(key)
    N, C, H, W = 2, 4, 16, 16
    x = jax.random.normal(kx, (N, C, H, W), dtype=jnp.float32)
    # Conv2d(C, C, 3, stride=1, padding=1, bias=False) weight, deterministic init.
    weight = 0.1 * jax.random.normal(kw, (C, C, 3, 3), dtype=jnp.float32)

    ref = _reference(x, weight)

    # f32 compute path, explicit row tiling (2 row tiles x 2 images) -- tight check.
    # (In-kernel f32 dots use the MXU's default precision, same as the XLA reference.)
    params_f32 = make_upsample2_params(weight, H, W, tile_h=16,
                                       compute_dtype=jnp.float32, batch_hint=N)
    out_f32 = jax.block_until_ready(upsample2_forward_nchw(params_f32, x))
    assert out_f32.shape == (N, C, 2 * H, 2 * W), out_f32.shape
    err_f32 = float(jnp.max(jnp.abs(out_f32.astype(jnp.float32) - ref)))
    assert err_f32 < 3e-4, err_f32

    # bf16 compute path (default, per perf review): bf16 operands + bf16 output,
    # f32 accumulation, tile_h / TILE_N picked from the VMEM budget, >= 2 parallel
    # grid iterations even at batch 1 (batch_hint default).  Looser check vs f32 ref.
    params_bf16 = make_upsample2_params(weight, H, W)
    fwd_bf16 = jax.jit(lambda xx: upsample2_forward_nchw(params_bf16, xx))
    out_bf16 = jax.block_until_ready(fwd_bf16(x))
    assert out_bf16.shape == (N, C, 2 * H, 2 * W), out_bf16.shape
    err_bf16 = float(jnp.max(jnp.abs(out_bf16.astype(jnp.float32) - ref)))
    assert err_bf16 < 1e-1, err_bf16

    # Channels-last production path (no NCHW transposes around the pallas_call).
    x_flat = jnp.transpose(x, (0, 2, 3, 1)).reshape(N, H, W * C)
    out_flat = jax.block_until_ready(upsample2_apply(params_bf16, x_flat))
    assert out_flat.shape == (N, 2 * H, 2 * W * C), out_flat.shape

    print("KERNEL_OK")
</pallas_src>

<mosaic_0001>
module attributes {stable_mosaic.version = 11 : i64} {
  func.func @_upsample2_conv_kernel(%arg0: i32, %arg1: i32, %arg2: i32, %arg3: memref<1x16x64xf32, #tpu.memory_space<vmem>>, %arg4: memref<1x24x16xf32, #tpu.memory_space<vmem>>, %arg5: memref<3x64x128xf32, #tpu.memory_space<vmem>>, %arg6: memref<1x16x128xf32, #tpu.memory_space<vmem>>) attributes {dimension_semantics = [#tpu.dimension_semantics<parallel>, #tpu.dimension_semantics<parallel>, #tpu.dimension_semantics<parallel>], iteration_bounds = array<i64: 2, 1, 2>, scalar_prefetch = 0 : i64, scratch_operands = 0 : i64, tpu.core_type = #tpu.core_type<tc>, window_params = [{transform_indices = @transform_0, window_bounds = array<i64: 1, 16, 64>}, {transform_indices = @transform_1, window_bounds = array<i64: 1, 24, 16>}, {transform_indices = @transform_2, window_bounds = array<i64: 3, 64, 128>}, {transform_indices = @transform_3, window_bounds = array<i64: 1, 16, 128>}]} {
    %c0 = arith.constant 0 : index
    %c0_0 = arith.constant 0 : index
    %c0_1 = arith.constant 0 : index
    %0 = vector.load %arg3[%c0, %c0_0, %c0_1] : memref<1x16x64xf32, #tpu.memory_space<vmem>>, vector<1x16x64xf32>
    %1 = vector.shape_cast %0 : vector<1x16x64xf32> to vector<16x64xf32>
    %c0_2 = arith.constant 0 : index
    %c0_3 = arith.constant 0 : index
    %c0_4 = arith.constant 0 : index
    %2 = vector.load %arg4[%c0_2, %c0_3, %c0_4] : memref<1x24x16xf32, #tpu.memory_space<vmem>>, vector<1x24x16xf32>
    %3 = vector.shape_cast %2 : vector<1x24x16xf32> to vector<24x16xf32>
    %cst = arith.constant dense<0.000000e+00> : vector<24x64xf32>
    %4 = tpu.matmul %3, %1, %cst {dimension_numbers = #tpu.dot_dimension_numbers<[1], [0], [0], [1], [0, 0, 1, 1], [], []>} : vector<24x16xf32>, vector<16x64xf32>, vector<24x64xf32> -> vector<24x64xf32>
    %5 = vector.extract_strided_slice %4 {offsets = [0, 0], sizes = [16, 64], strides = [1, 1]} : vector<24x64xf32> to vector<16x64xf32>
    %c0_5 = arith.constant 0 : index
    %c0_6 = arith.constant 0 : index
    %c0_7 = arith.constant 0 : index
    %6 = vector.load %arg5[%c0_5, %c0_6, %c0_7] : memref<3x64x128xf32, #tpu.memory_space<vmem>>, vector<1x64x128xf32>
    %7 = vector.shape_cast %6 : vector<1x64x128xf32> to vector<64x128xf32>
    %cst_8 = arith.constant dense<0.000000e+00> : vector<16x128xf32>
    %8 = tpu.matmul %5, %7, %cst_8 {dimension_numbers = #tpu.dot_dimension_numbers<[1], [0], [0], [1], [0, 0, 1, 1], [], []>} : vector<16x64xf32>, vector<64x128xf32>, vector<16x128xf32> -> vector<16x128xf32>
    %9 = vector.extract_strided_slice %4 {offsets = [1, 0], sizes = [16, 64], strides = [1, 1]} : vector<24x64xf32> to vector<16x64xf32>
    %c1 = arith.constant 1 : index
    %c0_9 = arith.constant 0 : index
    %c0_10 = arith.constant 0 : index
    %10 = vector.load %arg5[%c1, %c0_9, %c0_10] : memref<3x64x128xf32, #tpu.memory_space<vmem>>, vector<1x64x128xf32>
    %11 = vector.shape_cast %10 : vector<1x64x128xf32> to vector<64x128xf32>
    %cst_11 = arith.constant dense<0.000000e+00> : vector<16x128xf32>
    %12 = tpu.matmul %9, %11, %cst_11 {dimension_numbers = #tpu.dot_dimension_numbers<[1], [0], [0], [1], [0, 0, 1, 1], [], []>} : vector<16x64xf32>, vector<64x128xf32>, vector<16x128xf32> -> vector<16x128xf32>
    %13 = arith.addf %8, %12 : vector<16x128xf32>
    %14 = vector.extract_strided_slice %4 {offsets = [2, 0], sizes = [16, 64], strides = [1, 1]} : vector<24x64xf32> to vector<16x64xf32>
    %c2 = arith.constant 2 : index
    %c0_12 = arith.constant 0 : index
    %c0_13 = arith.constant 0 : index
    %15 = vector.load %arg5[%c2, %c0_12, %c0_13] : memref<3x64x128xf32, #tpu.memory_space<vmem>>, vector<1x64x128xf32>
    %16 = vector.shape_cast %15 : vector<1x64x128xf32> to vector<64x128xf32>
    %cst_14 = arith.constant dense<0.000000e+00> : vector<16x128xf32>
    %17 = tpu.matmul %14, %16, %cst_14 {dimension_numbers = #tpu.dot_dimension_numbers<[1], [0], [0], [1], [0, 0, 1, 1], [], []>} : vector<16x64xf32>, vector<64x128xf32>, vector<16x128xf32> -> vector<16x128xf32>
    %18 = arith.addf %13, %17 : vector<16x128xf32>
    %c0_15 = arith.constant 0 : index
    %c0_16 = arith.constant 0 : index
    %c0_17 = arith.constant 0 : index
    %19 = vector.load %arg6[%c0_15, %c0_16, %c0_17] : memref<1x16x128xf32, #tpu.memory_space<vmem>>, vector<1x16x128xf32>
    %20 = vector.shape_cast %19 : vector<1x16x128xf32> to vector<16x128xf32>
    %21 = vector.shape_cast %18 : vector<16x128xf32> to vector<1x16x128xf32>
    tpu.vector_store %arg6[%c0_15, %c0_16, %c0_17], %21 {strides = array<i32>} : memref<1x16x128xf32, #tpu.memory_space<vmem>>, vector<1x16x128xf32>,
    return
  }
  func.func @transform_0(%arg0: i32, %arg1: i32, %arg2: i32) -> (i32, i32, i32) {
    %c0_i32 = arith.constant 0 : i32
    %c0_i32_0 = arith.constant 0 : i32
    %c0_i32_1 = arith.constant 0 : i32
    return %arg0, %c0_i32, %c0_i32_0 : i32, i32, i32
  }
  func.func @transform_1(%arg0: i32, %arg1: i32, %arg2: i32) -> (i32, i32, i32) {
    %c0_i32 = arith.constant 0 : i32
    %c0_i32_0 = arith.constant 0 : i32
    %c0_i32_1 = arith.constant 0 : i32
    return %arg2, %c0_i32, %c0_i32_0 : i32, i32, i32
  }
  func.func @transform_2(%arg0: i32, %arg1: i32, %arg2: i32) -> (i32, i32, i32) {
    %c0_i32 = arith.constant 0 : i32
    %c0_i32_0 = arith.constant 0 : i32
    %c0_i32_1 = arith.constant 0 : i32
    return %c0_i32, %c0_i32_0, %arg1 : i32, i32, i32
  }
  func.func @transform_3(%arg0: i32, %arg1: i32, %arg2: i32) -> (i32, i32, i32) {
    %c0_i32 = arith.constant 0 : i32
    return %arg0, %arg2, %arg1 : i32, i32, i32
  }
}

</mosaic_0001>

<llo_original>
// kernel: tpu_custom_call.1
$region0: #{tpu_custom_call.1}
  #allocation0 [shape = 'u32[]', space=smem, size = 0x4, offset = 0x4, fixed_abs, tag = 'smem constant byte address 0x4 - core index']
  #allocation1 [shape = 'u32[72,128]{1,0:T(1,128)}', space=vmem, size = 0x9000, scoped, tag = 'internal scratch']
  %s0 = inlined_call_operand.vmem [shape: f32[2,16,64], index: 0, kind: input, shape index: {}]
  %s1 = inlined_call_operand.vmem [shape: f32[2,24,16], index: 1, kind: input, shape index: {}]
  %s2 = inlined_call_operand.hbm [shape: f32[3,64,128], index: 2, kind: input, shape index: {}]
  %s3 = inlined_call_operand.hbm [shape: f32[2,32,128], index: 3, kind: output, shape index: {}]
  %s4 = sld [smem:[#allocation0]]
  $region49: #{tpu_custom_call.1} parent=0
    _
  %s6 = ssub.s32 1, %s4
  %s7 = scalar_select 0, %s6, %s4
  $region1: #{tpu_custom_call.1} parent=0
    #allocation2 [shape = 'u8[98304]{0}', space=vmem, size = 0x18000, scoped, tag = 'input window, operand 2, single buffered']
    #allocation3 [shape = 's32[2]{0}', space=sflag, size = 0x8, scoped, tag = 'scoped memory for tpu_custom_call.1']
    #allocation4 [shape = 's32[2]{0}', space=sflag, size = 0x8, scoped, tag = 'scoped memory for tpu_custom_call.1']
    #allocation5 [shape = 'u8[16384]{0}', space=vmem, size = 0x4000, scoped, tag = 'output window, operand 0']
    %8 = vsyncpa [#allocation3], 0
    %9 = vsyncpa [#allocation4], 0
    %s10 = scalar_lea.sflag [#allocation4], 1
    %11 = vsyncpa %s10, 0
    loop: start=0, step=1, limit=6
    $region2: #{tpu_custom_call.1} parent=1 // loop_pre_header
      _
    $region3: #{tpu_custom_call.1} parent=1 // loop_header
      %s13 = sphi 0, %s17
      %p14 = scmp.ge.s32.totalorder %s13, 6
      %s20 = sphi 0, %s39
      %s21 = sphi 0, %s35
      %s22 = sphi 0, %s31
      %s23 = sphi 0, %s20
      %s24 = sphi 0, %s21
      %s25 = sphi 0, %s22
      %s26 = sphi 0, %s23
      %s27 = sphi 0, %s24
      %s28 = sphi 0, %s25
      %s42 = sphi 0, %s44
      %s45 = sphi 0, %s42
      %s46 = sphi 0, %s45
      %s62 = sphi 0, %s46
      %s68 = sphi 0, %s70
      %s71 = sphi 0, %s68
      %s72 = sphi 0, %s71
      %s88 = sphi 0, %s72
      %s94 = sphi 0, %s96
      %s97 = sphi 0, %s94
      %s98 = sphi 0, %s97
      %s114 = sphi 0, %s98
      %s124 = sphi 0, %s126
      %s127 = sphi 0, %s124
      %s128 = sphi 0, %s127
      %s144 = sphi 0, %s128
    $region4: #{tpu_custom_call.1} parent=1 // loop_header_branch
      %16 = sbr.rel (%p14) target = $region8
    $region5: #{tpu_custom_call.1} parent=1 // loop_body
      %s18 = ssub.s32 %s13, 1
      %s19 = ssub.s32 %s13, 2
      %s29 = sadd.s32 1, %s22
      %p30 = scmp.ge.s32.totalorder %s29, 2
      %s31 = scalar_select %p30, 0, %s29
      %s32 = sadd.s32 1, %s21
      %s33 = scalar_select %p30, %s32, %s21
      %p34 = scmp.ge.s32.totalorder %s33, 1
      %s35 = scalar_select %p34, 0, %s33
      %s36 = sadd.s32 1, %s20
      %s37 = scalar_select %p34, %s36, %s20
      %p38 = scmp.ge.s32.totalorder %s37, 2
      %s39 = scalar_select %p38, 0, %s37
      %s40 = ssub.s32 %s20, %s39
      %p41 = scmp.eq.s32.totalorder %s40, 0
      %s43 = sadd.s32 %s42, 1
      %s44 = scalar_select %p41, %s42, %s43
      %p47 = pneg %p41
      %p48 = scmp.eq.s32.totalorder %s13, 3
      %p49 = por %p47, %p48
      %p50 = scmp.ne.s32.totalorder %s42, %s45
      %p51 = scmp.eq.s32.totalorder %s13, 0
      %p52 = por %p50, %p51
      %p53 = scmp.ne.s32.totalorder %s42, %s45
      %p54 = scmp.eq.s32.totalorder %s18, 3
      %p55 = por %p53, %p54
      %p56 = scmp.ne.s32.totalorder %s45, %s46
      %p57 = scmp.eq.s32.totalorder %s18, 0
      %p58 = por %p56, %p57
      %p59 = scmp.ne.s32.totalorder %s45, %s46
      %p60 = scmp.eq.s32.totalorder %s19, 3
      %p61 = por %p59, %p60
      %p63 = scmp.ne.s32.totalorder %s46, %s62
      %p64 = scmp.eq.s32.totalorder %s19, 0
      %p65 = por %p63, %p64
      %s66 = ssub.s32 %s22, %s31
      %p67 = scmp.eq.s32.totalorder %s66, 0
      %s69 = sadd.s32 %s68, 1
      %s70 = scalar_select %p67, %s68, %s69
      %p73 = pneg %p67
      %p74 = scmp.eq.s32.totalorder %s13, 3
      %p75 = por %p73, %p74
      %p76 = scmp.ne.s32.totalorder %s68, %s71
      %p77 = scmp.eq.s32.totalorder %s13, 0
      %p78 = por %p76, %p77
      %p79 = scmp.ne.s32.totalorder %s68, %s71
      %p80 = scmp.eq.s32.totalorder %s18, 3
      %p81 = por %p79, %p80
      %p82 = scmp.ne.s32.totalorder %s71, %s72
      %p83 = scmp.eq.s32.totalorder %s18, 0
      %p84 = por %p82, %p83
      %p85 = scmp.ne.s32.totalorder %s71, %s72
      %p86 = scmp.eq.s32.totalorder %s19, 3
      %p87 = por %p85, %p86
      %p89 = scmp.ne.s32.totalorder %s72, %s88
      %p90 = scmp.eq.s32.totalorder %s19, 0
      %p91 = por %p89, %p90
      %s92 = ssub.s32 %s21, %s35
      %p93 = scmp.eq.s32.totalorder %s92, 0
      %s95 = sadd.s32 %s94, 1
      %s96 = scalar_select %p93, %s94, %s95
      %p99 = pneg %p93
      %p100 = scmp.eq.s32.totalorder %s13, 3
      %p101 = por %p99, %p100
      %p102 = scmp.ne.s32.totalorder %s94, %s97
      %p103 = scmp.eq.s32.totalorder %s13, 0
      %p104 = por %p102, %p103
      %p105 = scmp.ne.s32.totalorder %s94, %s97
      %p106 = scmp.eq.s32.totalorder %s18, 3
      %p107 = por %p105, %p106
      %p108 = scmp.ne.s32.totalorder %s97, %s98
      %p109 = scmp.eq.s32.totalorder %s18, 0
      %p110 = por %p108, %p109
      %p111 = scmp.ne.s32.totalorder %s97, %s98
      %p112 = scmp.eq.s32.totalorder %s19, 3
      %p113 = por %p111, %p112
      %p115 = scmp.ne.s32.totalorder %s98, %s114
      %p116 = scmp.eq.s32.totalorder %s19, 0
      %p117 = por %p115, %p116
      %s118 = ssub.s32 %s20, %s39
      %s119 = ssub.s32 %s22, %s31
      %s120 = sor.u32 %s118, %s119
      %s121 = ssub.s32 %s21, %s35
      %s122 = sor.u32 %s120, %s121
      %p123 = scmp.eq.s32.totalorder %s122, 0
      %s125 = sadd.s32 %s124, 1
      %s126 = scalar_select %p123, %s124, %s125
      %p129 = pneg %p123
      %p130 = scmp.eq.s32.totalorder %s13, 3
      %p131 = por %p129, %p130
      %p132 = scmp.ne.s32.totalorder %s124, %s127
      %p133 = scmp.eq.s32.totalorder %s13, 0
      %p134 = por %p132, %p133
      %p135 = scmp.ne.s32.totalorder %s124, %s127
      %p136 = scmp.eq.s32.totalorder %s18, 3
      %p137 = por %p135, %p136
      %p138 = scmp.ne.s32.totalorder %s127, %s128
      %p139 = scmp.eq.s32.totalorder %s18, 0
      %p140 = por %p138, %p139
      %p141 = scmp.ne.s32.totalorder %s127, %s128
      %p142 = scmp.eq.s32.totalorder %s19, 3
      %p143 = por %p141, %p142
      %p145 = scmp.ne.s32.totalorder %s128, %s144
      %p146 = scmp.eq.s32.totalorder %s19, 0
      %p147 = por %p145, %p146
      %p148 = scmp.le.s32.totalorder 1, %s13
      %p149 = scmp.lt.s32.totalorder %s13, 5
      %p150 = pnand %p148, %p149
      %p151 = pneg %p150
      // Predicated region
      $region9: #{tpu_custom_call.1} parent=5 // pred_check
        _
      $region10: #{tpu_custom_call.1} parent=5 // pred_check_branch
        %153 = sbr.rel (%p150) target = $region12
      $region11: #{tpu_custom_call.1} parent=5 // pred_region
        %s154 = ssub.s32 %s13, 1
        // Predicated region
        $region13: #{tpu_custom_call.1} parent=11 // pred_check
          %p155 = pneg %p110
        $region14: #{tpu_custom_call.1} parent=11 // pred_check_branch
          %157 = sbr.rel (%p155) target = $region16
        $region15: #{tpu_custom_call.1} parent=11 // pred_region
          %159 = vsyncadd [#allocation3], 0
          %s160 = smul.addr %s24, 8
          %s161 = scalar_lea.hbm %s2, %s160
          %s162 = sshll.u32 %s161, 4
          %s163 = int_to_ptr.hbm [resolvable:$true] %s162
          %s164 = sshll.u32 [#allocation2], 4
          %s165 = int_to_ptr.vmem [resolvable:$true] %s164
          %170 = dma.hbm_to_vmem [thread:$0]  %s163, 3072, %s165, [#allocation3], 128, 128, 8
        $region16: #{tpu_custom_call.1} parent=11 // pred_fallthru
          _
      $region12: #{tpu_custom_call.1} parent=5 // pred_fallthru
        _
      %p171 = scmp.lt.s32.totalorder %s13, 4
      // Predicated region
      $region17: #{tpu_custom_call.1} parent=5 // pred_check
        %p172 = pneg %p171
      $region18: #{tpu_custom_call.1} parent=5 // pred_check_branch
        %174 = sbr.rel (%p172) target = $region20
      $region19: #{tpu_custom_call.1} parent=5 // pred_region
        // Predicated region
        $region21: #{tpu_custom_call.1} parent=19 // pred_check
          %p175 = pneg %p52
        $region22: #{tpu_custom_call.1} parent=19 // pred_check_branch
          %177 = sbr.rel (%p175) target = $region24
        $region23: #{tpu_custom_call.1} parent=19 // pred_region
          %p178 = scmp.lt.s32.totalorder %s20, 1
          %s179 = scalar_select %p178, %s20, 1
          %s180 = smul.addr %s179, 2
          %s181 = smul.addr %s180, 8
          %s182 = scalar_lea.vmem %s0, %s181
        $region24: #{tpu_custom_call.1} parent=19 // pred_fallthru
          _
        // Predicated region
        $region25: #{tpu_custom_call.1} parent=19 // pred_check
          %p183 = pneg %p78
        $region26: #{tpu_custom_call.1} parent=19 // pred_check_branch
          %185 = sbr.rel (%p183) target = $region28
        $region27: #{tpu_custom_call.1} parent=19 // pred_region
          %p186 = scmp.lt.s32.totalorder %s22, 1
          %s187 = scalar_select %p186, %s22, 1
          %s188 = smul.addr %s187, 3
          %s189 = smul.addr %s188, 8
          %s190 = scalar_lea.vmem %s1, %s189
        $region28: #{tpu_custom_call.1} parent=19 // pred_fallthru
          _
      $region20: #{tpu_custom_call.1} parent=5 // pred_fallthru
        _
      %p191 = scmp.le.s32.totalorder 1, %s13
      %p192 = scmp.lt.s32.totalorder %s13, 5
      %p193 = pnand %p191, %p192
      %p194 = pneg %p193
      // Predicated region
      $region29: #{tpu_custom_call.1} parent=5 // pred_check
        _
      $region30: #{tpu_custom_call.1} parent=5 // pred_check_branch
        %196 = sbr.rel (%p193) target = $region32
      $region31: #{tpu_custom_call.1} parent=5 // pred_region
        %s197 = ssub.s32 %s13, 1
        // Predicated region
        $region33: #{tpu_custom_call.1} parent=31 // pred_check
          %p198 = pneg %p110
        $region34: #{tpu_custom_call.1} parent=31 // pred_check_branch
          %200 = sbr.rel (%p198) target = $region36
        $region35: #{tpu_custom_call.1} parent=31 // pred_region
          %202 = dma.done [#allocation3], 3072
        $region36: #{tpu_custom_call.1} parent=31 // pred_fallthru
          _
        %p203 = scmp.lt.s32.totalorder %s23, 1
        %s204 = scalar_select %p203, %s23, 1
        %s205 = smul.addr %s204, 2
        %s206 = smul.addr %s205, 8
        %s207 = scalar_lea.vmem %s0, %s206
        %p208 = pneg %p58
        %p209 = pneg %p55
        %p210 = scmp.lt.s32.totalorder %s25, 1
        %s211 = scalar_select %p210, %s25, 1
        %s212 = smul.addr %s211, 3
        %s213 = smul.addr %s212, 8
        %s214 = scalar_lea.vmem %s1, %s213
        %p215 = pneg %p84
        %p216 = pneg %p81
        %p217 = pneg %p110
        %p218 = pneg %p107
        %p219 = pneg %p140
        %p220 = pneg %p137
        %s221 = sand.u32 %s127, 1
        %s222 = scalar_lea.sflag [#allocation4], %s221
        %s223 = sand.u32 %s127, 1
        %s224 = smul.addr %s223, 16
        %s225 = scalar_lea.vmem [#allocation5], %s224
        %p226 = scmp.lt.s32.totalorder %s23, 1
        %s227 = scalar_select %p226, %s23, 1
        %s228 = smul.addr %s227, 2
        %s229 = smul.addr %s228, 8
        %s230 = scalar_lea.vmem %s0, %s229
        %p231 = scmp.lt.s32.totalorder %s25, 1
        %s232 = scalar_select %p231, %s25, 1
        %s233 = smul.addr %s232, 3
        %s234 = smul.addr %s233, 8
        %s235 = scalar_lea.vmem %s1, %s234
        %s236 = smul.u32 2, %s25
        %v237 = vld [vmem:[%s230] sm:$0xff]
        %v238 = vld [vmem:[%s230 + $0x8] sm:$0xff]
        %v239 = vld [vmem:[%s235] sm:$0xff]
        %v240 = vld [vmem:[%s235 + $0x8] sm:$0xff]
        %v241 = vld [vmem:[%s235 + $0x10] sm:$0xff]
        %vm242 = vcmask 130048
        %v244 = vsel %vm242, %v239, 0
        %v247 = vsel %vm242, %v240, 0
        %v250 = vsel %vm242, %v241, 0
        %252 = vmatpush.msra.mxu0 0.0
        %253 = vmatpush.msra.mxu0 0.0
        %254 = vmatpush.msra.mxu0 0.0
        %255 = vmatpush.msra.mxu0 0.0
        %256 = vmatpush.msra.mxu0 0.0
        %257 = vmatpush.msra.mxu0 0.0
        %258 = vmatpush.msra.mxu0 0.0
        %259 = vmatpush.msra.mxu0 0.0
        %260 = vmatpush.msra.mxu0 0.0
        %261 = vmatpush.msra.mxu0 0.0
        %262 = vmatpush.msra.mxu0 0.0
        %263 = vmatpush.msra.mxu0 0.0
        %264 = vmatpush.msra.mxu0 0.0
        %265 = vmatpush.msra.mxu0 0.0
        %266 = vmatpush.msra.mxu0 %v238
        %267 = vmatpush.msra.mxu0 %v237
        %268 = vmatmul.f32.gmra.mxu0 %v244
        %v269 = vpop.f32.mrf.mxu0
        %v270 = vadd.f32 0.0, %v269
        %271 = vmatmul.f32.gmra.mxu0 %v247
        %v272 = vpop.f32.mrf.mxu0
        %v273 = vadd.f32 0.0, %v272
        %274 = vmatmul.f32.gmra.mxu0 %v250
        %v275 = vpop.f32.mrf.mxu0
        %v276 = vadd.f32 0.0, %v275
        %277 = vdwg.mxu0
        %v278 = vld [vmem:[#allocation2] sm:$0xff]
        %v279 = vld [vmem:[#allocation2 + $0x8] sm:$0xff]
        %v280 = vld [vmem:[#allocation2 + $0x10] sm:$0xff]
        %v281 = vld [vmem:[#allocation2 + $0x18] sm:$0xff]
        %v282 = vld [vmem:[#allocation2 + $0x20] sm:$0xff]
        %v283 = vld [vmem:[#allocation2 + $0x28] sm:$0xff]
        %v284 = vld [vmem:[#allocation2 + $0x30] sm:$0xff]
        %v285 = vld [vmem:[#allocation2 + $0x38] sm:$0xff]
        %s286 = scalar_lea.vmem [#allocation2], 64
        %v287 = vld [vmem:[%s286] sm:$0xff]
        %v288 = vld [vmem:[%s286 + $0x8] sm:$0xff]
        %v289 = vld [vmem:[%s286 + $0x10] sm:$0xff]
        %v290 = vld [vmem:[%s286 + $0x18] sm:$0xff]
        %v291 = vld [vmem:[%s286 + $0x20] sm:$0xff]
        %v292 = vld [vmem:[%s286 + $0x28] sm:$0xff]
        %v293 = vld [vmem:[%s286 + $0x30] sm:$0xff]
        %v294 = vld [vmem:[%s286 + $0x38] sm:$0xff]
        %vm298 = vcmask 1046528
        %v299 = vrot.slane %v270, 1
        %v300 = vrot.slane %v273, 1
        %v301 = vsel %vm298, %v299, %v300
        %v302 = vrot.slane %v276, 1
        %v303 = vsel %vm298, %v300, %v302
        %vm304 = vcmask 523264
        %v305 = vsel %vm304, %v301, 0
        %v307 = vsel %vm304, %v303, 0
        %309 = vmatpush.msra.mxu0 0.0
        %310 = vmatpush.msra.mxu0 0.0
        %311 = vmatpush.msra.mxu0 0.0
        %312 = vmatpush.msra.mxu0 0.0
        %313 = vmatpush.msra.mxu0 0.0
        %314 = vmatpush.msra.mxu0 0.0
        %315 = vmatpush.msra.mxu0 0.0
        %316 = vmatpush.msra.mxu0 0.0
        %317 = vmatpush.msra.mxu0 %v294
        %318 = vmatpush.msra.mxu0 %v293
        %319 = vmatpush.msra.mxu0 %v292
        %320 = vmatpush.msra.mxu0 %v291
        %321 = vmatpush.msra.mxu0 %v290
        %322 = vmatpush.msra.mxu0 %v289
        %323 = vmatpush.msra.mxu0 %v288
        %324 = vmatpush.msra.mxu0 %v287
        %325 = vmatmul.f32.gmra.mxu0 %v305
        %v326 = vpop.f32.mrf.mxu0
        %v327 = vadd.f32 0.0, %v326
        %328 = vmatmul.f32.gmra.mxu0 %v307
        %v329 = vpop.f32.mrf.mxu0
        %v330 = vadd.f32 0.0, %v329
        %331 = vdwg.mxu0
        %v332 = vsel %vm304, %v270, 0
        %v334 = vsel %vm304, %v273, 0
        %336 = vmatpush.msra.mxu0 0.0
        %337 = vmatpush.msra.mxu0 0.0
        %338 = vmatpush.msra.mxu0 0.0
        %339 = vmatpush.msra.mxu0 0.0
        %340 = vmatpush.msra.mxu0 0.0
        %341 = vmatpush.msra.mxu0 0.0
        %342 = vmatpush.msra.mxu0 0.0
        %343 = vmatpush.msra.mxu0 0.0
        %344 = vmatpush.msra.mxu0 %v285
        %345 = vmatpush.msra.mxu0 %v284
        %346 = vmatpush.msra.mxu0 %v283
        %347 = vmatpush.msra.mxu0 %v282
        %348 = vmatpush.msra.mxu0 %v281
        %349 = vmatpush.msra.mxu0 %v280
        %350 = vmatpush.msra.mxu0 %v279
        %351 = vmatpush.msra.mxu0 %v278
        %352 = vmatmul.f32.gmra.mxu0 %v332
        %v353 = vpop.f32.mrf.mxu0
        %v354 = vadd.f32 %v327, %v353
        %355 = vmatmul.f32.gmra.mxu0 %v334
        %v356 = vpop.f32.mrf.mxu0
        %v357 = vadd.f32 %v330, %v356
        %358 = vdwg.mxu0
        %s359 = scalar_lea.vmem [#allocation2], 128
        %v360 = vld [vmem:[%s359] sm:$0xff]
        %v361 = vld [vmem:[%s359 + $0x8] sm:$0xff]
        %v362 = vld [vmem:[%s359 + $0x10] sm:$0xff]
        %v363 = vld [vmem:[%s359 + $0x18] sm:$0xff]
        %v364 = vld [vmem:[%s359 + $0x20] sm:$0xff]
        %v365 = vld [vmem:[%s359 + $0x28] sm:$0xff]
        %v366 = vld [vmem:[%s359 + $0x30] sm:$0xff]
        %v367 = vld [vmem:[%s359 + $0x38] sm:$0xff]
        %vm368 = vcmask 1045504
        %v369 = vrot.slane %v270, 2
        %v370 = vrot.slane %v273, 2
        %v371 = vsel %vm368, %v369, %v370
        %v372 = vrot.slane %v276, 2
        %v373 = vsel %vm368, %v370, %v372
        %v374 = vsel %vm304, %v371, 0
        %v376 = vsel %vm304, %v373, 0
        %378 = vmatpush.msra.mxu0 0.0
        %379 = vmatpush.msra.mxu0 0.0
        %380 = vmatpush.msra.mxu0 0.0
        %381 = vmatpush.msra.mxu0 0.0
        %382 = vmatpush.msra.mxu0 0.0
        %383 = vmatpush.msra.mxu0 0.0
        %384 = vmatpush.msra.mxu0 0.0
        %385 = vmatpush.msra.mxu0 0.0
        %386 = vmatpush.msra.mxu0 %v367
        %387 = vmatpush.msra.mxu0 %v366
        %388 = vmatpush.msra.mxu0 %v365
        %389 = vmatpush.msra.mxu0 %v364
        %390 = vmatpush.msra.mxu0 %v363
        %391 = vmatpush.msra.mxu0 %v362
        %392 = vmatpush.msra.mxu0 %v361
        %393 = vmatpush.msra.mxu0 %v360
        %394 = vmatmul.f32.gmra.mxu0 %v374
        %v395 = vpop.f32.mrf.mxu0
        %v396 = vadd.f32 0.0, %v395
        %397 = vmatmul.f32.gmra.mxu0 %v376
        %v398 = vpop.f32.mrf.mxu0
        %v399 = vadd.f32 0.0, %v398
        %400 = vdwg.mxu0
        %v401 = vadd.f32 %v354, %v396
        %v402 = vadd.f32 %v357, %v399
        %403 = vst [vmem:[%s225] sm:$0xff] %v401
        %404 = vst [vmem:[%s225 + $0x8] sm:$0xff] %v402
        %s405 = sand.u32 %s127, 1
        %s406 = scalar_lea.sflag [#allocation4], %s405
        %s407 = sand.u32 %s127, 1
        %s408 = smul.addr %s407, 16
        %s409 = scalar_lea.vmem [#allocation5], %s408
        // Predicated region
        $region37: #{tpu_custom_call.1} parent=31 // pred_check
          %p410 = pneg %p137
        $region38: #{tpu_custom_call.1} parent=31 // pred_check_branch
          %412 = sbr.rel (%p410) target = $region40
        $region39: #{tpu_custom_call.1} parent=31 // pred_region
          %s413 = smul.u32 2, %s25
          %415 = vsyncadd %s406, 0
          %s416 = sadd.s32 %s24, %s413
          %s417 = smul.addr %s23, 4
          %s418 = sadd.s32 %s416, %s417
          %s419 = smul.addr %s418, 8
          %s420 = scalar_lea.hbm %s3, %s419
          %s421 = sshll.u32 %s409, 4
          %s422 = int_to_ptr.vmem [resolvable:$true] %s421
          %s423 = sshll.u32 %s420, 4
          %s424 = int_to_ptr.hbm [resolvable:$true] %s423
          %429 = dma.vmem_to_hbm [thread:$0]  %s422, 256, %s424, %s406, 128, 128, 8
        $region40: #{tpu_custom_call.1} parent=31 // pred_fallthru
          _
      $region32: #{tpu_custom_call.1} parent=5 // pred_fallthru
        _
      %p430 = scmp.le.s32.totalorder 2, %s13
      // Predicated region
      $region41: #{tpu_custom_call.1} parent=5 // pred_check
        %p431 = pneg %p430
      $region42: #{tpu_custom_call.1} parent=5 // pred_check_branch
        %433 = sbr.rel (%p431) target = $region44
      $region43: #{tpu_custom_call.1} parent=5 // pred_region
        %s434 = ssub.s32 %s13, 2
        // Predicated region
        $region45: #{tpu_custom_call.1} parent=43 // pred_check
          %p435 = pneg %p143
        $region46: #{tpu_custom_call.1} parent=43 // pred_check_branch
          %437 = sbr.rel (%p435) target = $region48
        $region47: #{tpu_custom_call.1} parent=43 // pred_region
          %s438 = sand.u32 %s128, 1
          %s439 = scalar_lea.sflag [#allocation4], %s438
          %s440 = sand.u32 %s128, 1
          %s441 = smul.addr %s440, 16
          %s442 = scalar_lea.vmem [#allocation5], %s441
          %444 = dma.done %s439, 256
        $region48: #{tpu_custom_call.1} parent=43 // pred_fallthru
          _
      $region44: #{tpu_custom_call.1} parent=5 // pred_fallthru
        _
    $region6: #{tpu_custom_call.1} parent=1 // loop_footer
      %s17 = sadd.s32 1, %s13
    $region7: #{tpu_custom_call.1} parent=1 // loop_footer_branch
      %12 = sbr.rel target = $region3
    $region8: #{tpu_custom_call.1} parent=1 // loop_exit
      _
    %445 = vsyncpa [#allocation3], 1
    %s446 = scalar_lea.sflag [#allocation3], 1
    %447 = vsyncpa %s446, 1
    %448 = vsyncpa [#allocation4], 1
    %s449 = scalar_lea.sflag [#allocation4], 1
    %450 = vsyncpa %s449, 1

</llo_original>
